<compile_context>
chip_gen: v6e
topology: v6e:2x2x1
jax: 0.10.0
libtpu: 0.0.40
codegen_flags: <defaults>
</compile_context>

<pallas_src>
import jax
import jax.numpy as jnp
from jax import lax
from jax.experimental import pallas as pl
from jax.experimental.pallas import tpu as pltpu


def mlp_kernel(x_ref,
               w1_ref, b1_ref,
               w2_ref, b2_ref,
               w3_ref, b3_ref,
               w4_ref, b4_ref,
               o_ref):
    """Fused 4-layer MLP on one batch tile.

    x_ref : (tile_b, ndIn)  native input layout (batch on sublanes)
    wi_ref: (out_i, in_i)   native PyTorch nn.Linear weight layout
    b1..b3: (nN, 1)         bias columns (broadcast over the lane/batch axis)
    b4    : (1, ndOut)      bias row (broadcast over the sublane/batch axis)
    o_ref : (tile_b, ndOut) native output layout
    """
    x = x_ref[...]

    # h1^T = W1 @ x^T : contract ndIn; result (nN, tile_b) -> batch on lanes.
    h = lax.dot_general(w1_ref[...], x, (((1,), (1,)), ((), ())),
                        preferred_element_type=jnp.float32)
    h = jnp.maximum(h + b1_ref[...], 0.0)            # fused bias + ReLU (one VPU pass)

    h = jnp.dot(w2_ref[...], h, preferred_element_type=jnp.float32)
    h = jnp.maximum(h + b2_ref[...], 0.0)

    h = jnp.dot(w3_ref[...], h, preferred_element_type=jnp.float32)
    h = jnp.maximum(h + b3_ref[...], 0.0)

    # y = h3^T @ W4^T : contract nN; result (tile_b, ndOut) is already the
    # native output layout, so no output transpose is ever materialized.
    y = lax.dot_general(h, w4_ref[...], (((0,), (1,)), ((), ())),
                        preferred_element_type=jnp.float32)
    o_ref[...] = (y + b4_ref[...]).astype(o_ref.dtype)


def neural_network_forward(x, params, *, tile_b=512, max_single_tile=2048):
    """x: (B, ndIn); params: W1..W4 in PyTorch (out, in) layout, b1..b4 (out,)."""
    B, ndIn = x.shape
    nN = params["W1"].shape[0]
    ndOut = params["W4"].shape[0]

    f32 = jnp.float32
    w1 = params["W1"].astype(f32)                    # (nN, ndIn)
    w2 = params["W2"].astype(f32)                    # (nN, nN)
    w3 = params["W3"].astype(f32)                    # (nN, nN)
    w4 = params["W4"].astype(f32)                    # (ndOut, nN)
    b1 = params["b1"].reshape(nN, 1).astype(f32)
    b2 = params["b2"].reshape(nN, 1).astype(f32)
    b3 = params["b3"].reshape(nN, 1).astype(f32)
    b4 = params["b4"].reshape(1, ndOut).astype(f32)

    if B <= max_single_tile:
        # One right-sized grid step: block shape == full array, so no (8,128)
        # divisibility constraint, no padding, no per-step overhead, and no
        # point sharding sub-microsecond work across TensorCores.
        tb = B
        grid = (1,)
        semantics = ("arbitrary",)
    else:
        # Large batch: tile the batch dim; tiles are independent so shard
        # across v7x's two TensorCores.  Batch rows are independent, so a
        # partial last block (overhang reads unspecified, writes masked) is
        # harmless -- no jnp.pad needed.
        # TODO(synk): sweep tile_b if this path is ever hot.
        tb = tile_b
        grid = (pl.cdiv(B, tb),)
        semantics = ("parallel",)

    def resident():
        # Whole array resident in VMEM for the entire call: single buffer,
        # no per-step DMA, no double-buffering of invariant weights/biases.
        return pl.BlockSpec(memory_space=pltpu.MemorySpace.VMEM)

    out = pl.pallas_call(
        mlp_kernel,
        out_shape=jax.ShapeDtypeStruct((B, ndOut), x.dtype),
        grid=grid,
        in_specs=[
            pl.BlockSpec((tb, ndIn), lambda i: (i, 0)),   # x batch tile (native layout)
            resident(), resident(),    # W1, b1
            resident(), resident(),    # W2, b2
            resident(), resident(),    # W3, b3
            resident(), resident(),    # W4, b4
        ],
        out_specs=pl.BlockSpec((tb, ndOut), lambda i: (i, 0)),
        compiler_params=pltpu.CompilerParams(dimension_semantics=semantics),
    )(x, w1, b1, w2, b2, w3, b3, w4, b4)
    return out


def init_params(key, inputDim, outputDim, numNeurons, dtype=jnp.float32):
    """Deterministic synthetic init mirroring nn.Linear parameter shapes."""
    dims = [(numNeurons, inputDim),
            (numNeurons, numNeurons),
            (numNeurons, numNeurons),
            (outputDim, numNeurons)]
    params = {}
    for idx, (fan_out, fan_in) in enumerate(dims, start=1):
        key, kw, kb = jax.random.split(key, 3)
        bound = 1.0 / jnp.sqrt(fan_in)
        params[f"W{idx}"] = jax.random.uniform(
            kw, (fan_out, fan_in), dtype, minval=-bound, maxval=bound)
        params[f"b{idx}"] = jax.random.uniform(
            kb, (fan_out,), dtype, minval=-bound, maxval=bound)
    return params


def reference_forward(x, p):
    h = jnp.maximum(x @ p["W1"].T + p["b1"], 0.0)
    h = jnp.maximum(h @ p["W2"].T + p["b2"], 0.0)
    h = jnp.maximum(h @ p["W3"].T + p["b3"], 0.0)
    return h @ p["W4"].T + p["b4"]


if __name__ == "__main__":
    inputDim, outputDim, numNeurons = 16, 8, 32
    batch = 300   # deliberately NOT a multiple of 8/128: single-tile path, no padding

    key = jax.random.PRNGKey(0)
    kx, kp = jax.random.split(key)
    x = jax.random.normal(kx, (batch, inputDim), jnp.float32)
    params = init_params(kp, inputDim, outputDim, numNeurons)

    y = neural_network_forward(x, params)
    y = jax.block_until_ready(y)

    y_ref = reference_forward(x, params)
    assert y.shape == (batch, outputDim)
    assert jnp.allclose(y, y_ref, atol=1e-5, rtol=1e-5), "mismatch vs reference"

    print("KERNEL_OK")
</pallas_src>

<mosaic_0001>
module attributes {stable_mosaic.version = 11 : i64} {
  func.func @mlp_kernel(%arg0: i32, %arg1: memref<300x16xf32, #tpu.memory_space<vmem>>, %arg2: memref<32x16xf32, #tpu.memory_space<vmem>>, %arg3: memref<32x1xf32, #tpu.memory_space<vmem>>, %arg4: memref<32x32xf32, #tpu.memory_space<vmem>>, %arg5: memref<32x1xf32, #tpu.memory_space<vmem>>, %arg6: memref<32x32xf32, #tpu.memory_space<vmem>>, %arg7: memref<32x1xf32, #tpu.memory_space<vmem>>, %arg8: memref<8x32xf32, #tpu.memory_space<vmem>>, %arg9: memref<1x8xf32, #tpu.memory_space<vmem>>, %arg10: memref<300x8xf32, #tpu.memory_space<vmem>>) attributes {dimension_semantics = [#tpu.dimension_semantics<arbitrary>], iteration_bounds = array<i64: 1>, scalar_prefetch = 0 : i64, scratch_operands = 0 : i64, tpu.core_type = #tpu.core_type<tc>, window_params = [{transform_indices = @transform_0, window_bounds = array<i64: 300, 16>}, {pipeline_mode = #tpu.pipeline_mode<synchronous>, transform_indices = @transform_1, window_bounds = array<i64: 32, 16>}, {pipeline_mode = #tpu.pipeline_mode<synchronous>, transform_indices = @transform_2, window_bounds = array<i64: 32, 1>}, {pipeline_mode = #tpu.pipeline_mode<synchronous>, transform_indices = @transform_3, window_bounds = array<i64: 32, 32>}, {pipeline_mode = #tpu.pipeline_mode<synchronous>, transform_indices = @transform_4, window_bounds = array<i64: 32, 1>}, {pipeline_mode = #tpu.pipeline_mode<synchronous>, transform_indices = @transform_5, window_bounds = array<i64: 32, 32>}, {pipeline_mode = #tpu.pipeline_mode<synchronous>, transform_indices = @transform_6, window_bounds = array<i64: 32, 1>}, {pipeline_mode = #tpu.pipeline_mode<synchronous>, transform_indices = @transform_7, window_bounds = array<i64: 8, 32>}, {pipeline_mode = #tpu.pipeline_mode<synchronous>, transform_indices = @transform_8, window_bounds = array<i64: 1, 8>}, {transform_indices = @transform_9, window_bounds = array<i64: 300, 8>}]} {
    %c0 = arith.constant 0 : index
    %c0_0 = arith.constant 0 : index
    %0 = vector.load %arg1[%c0, %c0_0] : memref<300x16xf32, #tpu.memory_space<vmem>>, vector<300x16xf32>
    %c0_1 = arith.constant 0 : index
    %c0_2 = arith.constant 0 : index
    %1 = vector.load %arg2[%c0_1, %c0_2] : memref<32x16xf32, #tpu.memory_space<vmem>>, vector<32x16xf32>
    %cst = arith.constant dense<0.000000e+00> : vector<32x300xf32>
    %2 = tpu.matmul %1, %0, %cst {dimension_numbers = #tpu.dot_dimension_numbers<[1], [1], [0], [0], [0, 0, 1, 0], [], []>} : vector<32x16xf32>, vector<300x16xf32>, vector<32x300xf32> -> vector<32x300xf32>
    %c0_3 = arith.constant 0 : index
    %c0_4 = arith.constant 0 : index
    %3 = vector.load %arg3[%c0_3, %c0_4] : memref<32x1xf32, #tpu.memory_space<vmem>>, vector<32x1xf32>
    %4 = vector.broadcast %3 : vector<32x1xf32> to vector<32x300xf32>
    %5 = arith.addf %2, %4 : vector<32x300xf32>
    %cst_5 = arith.constant 0.000000e+00 : f32
    %6 = vector.broadcast %cst_5 : f32 to vector<32x300xf32>
    %7 = arith.maximumf %5, %6 : vector<32x300xf32>
    %c0_6 = arith.constant 0 : index
    %c0_7 = arith.constant 0 : index
    %8 = vector.load %arg4[%c0_6, %c0_7] : memref<32x32xf32, #tpu.memory_space<vmem>>, vector<32x32xf32>
    %cst_8 = arith.constant dense<0.000000e+00> : vector<32x300xf32>
    %9 = tpu.matmul %8, %7, %cst_8 {dimension_numbers = #tpu.dot_dimension_numbers<[1], [0], [0], [1], [0, 0, 1, 1], [], []>} : vector<32x32xf32>, vector<32x300xf32>, vector<32x300xf32> -> vector<32x300xf32>
    %c0_9 = arith.constant 0 : index
    %c0_10 = arith.constant 0 : index
    %10 = vector.load %arg5[%c0_9, %c0_10] : memref<32x1xf32, #tpu.memory_space<vmem>>, vector<32x1xf32>
    %11 = vector.broadcast %10 : vector<32x1xf32> to vector<32x300xf32>
    %12 = arith.addf %9, %11 : vector<32x300xf32>
    %cst_11 = arith.constant 0.000000e+00 : f32
    %13 = vector.broadcast %cst_11 : f32 to vector<32x300xf32>
    %14 = arith.maximumf %12, %13 : vector<32x300xf32>
    %c0_12 = arith.constant 0 : index
    %c0_13 = arith.constant 0 : index
    %15 = vector.load %arg6[%c0_12, %c0_13] : memref<32x32xf32, #tpu.memory_space<vmem>>, vector<32x32xf32>
    %cst_14 = arith.constant dense<0.000000e+00> : vector<32x300xf32>
    %16 = tpu.matmul %15, %14, %cst_14 {dimension_numbers = #tpu.dot_dimension_numbers<[1], [0], [0], [1], [0, 0, 1, 1], [], []>} : vector<32x32xf32>, vector<32x300xf32>, vector<32x300xf32> -> vector<32x300xf32>
    %c0_15 = arith.constant 0 : index
    %c0_16 = arith.constant 0 : index
    %17 = vector.load %arg7[%c0_15, %c0_16] : memref<32x1xf32, #tpu.memory_space<vmem>>, vector<32x1xf32>
    %18 = vector.broadcast %17 : vector<32x1xf32> to vector<32x300xf32>
    %19 = arith.addf %16, %18 : vector<32x300xf32>
    %cst_17 = arith.constant 0.000000e+00 : f32
    %20 = vector.broadcast %cst_17 : f32 to vector<32x300xf32>
    %21 = arith.maximumf %19, %20 : vector<32x300xf32>
    %c0_18 = arith.constant 0 : index
    %c0_19 = arith.constant 0 : index
    %22 = vector.load %arg8[%c0_18, %c0_19] : memref<8x32xf32, #tpu.memory_space<vmem>>, vector<8x32xf32>
    %cst_20 = arith.constant dense<0.000000e+00> : vector<300x8xf32>
    %23 = tpu.matmul %21, %22, %cst_20 {dimension_numbers = #tpu.dot_dimension_numbers<[0], [1], [1], [0], [0, 1, 1, 0], [], []>} : vector<32x300xf32>, vector<8x32xf32>, vector<300x8xf32> -> vector<300x8xf32>
    %c0_21 = arith.constant 0 : index
    %c0_22 = arith.constant 0 : index
    %24 = vector.load %arg9[%c0_21, %c0_22] : memref<1x8xf32, #tpu.memory_space<vmem>>, vector<1x8xf32>
    %25 = vector.broadcast %24 : vector<1x8xf32> to vector<300x8xf32>
    %26 = arith.addf %23, %25 : vector<300x8xf32>
    %c0_23 = arith.constant 0 : index
    %c0_24 = arith.constant 0 : index
    %27 = vector.load %arg10[%c0_23, %c0_24] : memref<300x8xf32, #tpu.memory_space<vmem>>, vector<300x8xf32>
    tpu.vector_store %arg10[%c0_23, %c0_24], %26 {strides = array<i32>} : memref<300x8xf32, #tpu.memory_space<vmem>>, vector<300x8xf32>,
    return
  }
  func.func @transform_0(%arg0: i32) -> (i32, i32) {
    %c0_i32 = arith.constant 0 : i32
    %c0_i32_0 = arith.constant 0 : i32
    return %arg0, %c0_i32 : i32, i32
  }
  func.func @transform_1(%arg0: i32) -> (i32, i32) {
    %c0_i32 = arith.constant 0 : i32
    %c0_i32_0 = arith.constant 0 : i32
    %c0_i32_1 = arith.constant 0 : i32
    return %c0_i32, %c0_i32_0 : i32, i32
  }
  func.func @transform_2(%arg0: i32) -> (i32, i32) {
    %c0_i32 = arith.constant 0 : i32
    %c0_i32_0 = arith.constant 0 : i32
    %c0_i32_1 = arith.constant 0 : i32
    return %c0_i32, %c0_i32_0 : i32, i32
  }
  func.func @transform_3(%arg0: i32) -> (i32, i32) {
    %c0_i32 = arith.constant 0 : i32
    %c0_i32_0 = arith.constant 0 : i32
    %c0_i32_1 = arith.constant 0 : i32
    return %c0_i32, %c0_i32_0 : i32, i32
  }
  func.func @transform_4(%arg0: i32) -> (i32, i32) {
    %c0_i32 = arith.constant 0 : i32
    %c0_i32_0 = arith.constant 0 : i32
    %c0_i32_1 = arith.constant 0 : i32
    return %c0_i32, %c0_i32_0 : i32, i32
  }
  func.func @transform_5(%arg0: i32) -> (i32, i32) {
    %c0_i32 = arith.constant 0 : i32
    %c0_i32_0 = arith.constant 0 : i32
    %c0_i32_1 = arith.constant 0 : i32
    return %c0_i32, %c0_i32_0 : i32, i32
  }
  func.func @transform_6(%arg0: i32) -> (i32, i32) {
    %c0_i32 = arith.constant 0 : i32
    %c0_i32_0 = arith.constant 0 : i32
    %c0_i32_1 = arith.constant 0 : i32
    return %c0_i32, %c0_i32_0 : i32, i32
  }
  func.func @transform_7(%arg0: i32) -> (i32, i32) {
    %c0_i32 = arith.constant 0 : i32
    %c0_i32_0 = arith.constant 0 : i32
    %c0_i32_1 = arith.constant 0 : i32
    return %c0_i32, %c0_i32_0 : i32, i32
  }
  func.func @transform_8(%arg0: i32) -> (i32, i32) {
    %c0_i32 = arith.constant 0 : i32
    %c0_i32_0 = arith.constant 0 : i32
    %c0_i32_1 = arith.constant 0 : i32
    return %c0_i32, %c0_i32_0 : i32, i32
  }
  func.func @transform_9(%arg0: i32) -> (i32, i32) {
    %c0_i32 = arith.constant 0 : i32
    %c0_i32_0 = arith.constant 0 : i32
    return %arg0, %c0_i32 : i32, i32
  }
}

</mosaic_0001>

<llo_original>
// kernel: tpu_custom_call.1
$region0: #{tpu_custom_call.1}
  #allocation0 [shape = 'u32[]', space=smem, size = 0x4, offset = 0x4, fixed_abs, tag = 'smem constant byte address 0x4 - core index']
  #allocation1 [shape = 'u32[144,128]{1,0:T(1,128)}', space=vmem, size = 0x12000, scoped, tag = 'internal scratch']
  %s0 = inlined_call_operand.vmem [shape: f32[300,16], index: 0, kind: input, shape index: {}]
  %s1 = inlined_call_operand.vmem [shape: f32[32,16], index: 1, kind: input, shape index: {}]
  %s2 = inlined_call_operand.vmem [shape: f32[32,1], index: 2, kind: input, shape index: {}]
  %s3 = inlined_call_operand.vmem [shape: f32[32,32], index: 3, kind: input, shape index: {}]
  %s4 = inlined_call_operand.vmem [shape: f32[32,1], index: 4, kind: input, shape index: {}]
  %s5 = inlined_call_operand.vmem [shape: f32[32,32], index: 5, kind: input, shape index: {}]
  %s6 = inlined_call_operand.vmem [shape: f32[32,1], index: 6, kind: input, shape index: {}]
  %s7 = inlined_call_operand.vmem [shape: f32[8,32], index: 7, kind: input, shape index: {}]
  %s8 = inlined_call_operand.vmem [shape: f32[1,8], index: 8, kind: input, shape index: {}]
  %s9 = inlined_call_operand.vmem [shape: f32[300,8], index: 9, kind: output, shape index: {}]
  %s10 = sld [smem:[#allocation0]]
  $region46: #{tpu_custom_call.1} parent=0
    _
  %s12 = ssub.s32 1, %s10
  %s13 = scalar_select 0, %s12, %s10
  // Predicated region
  $region2: #{tpu_custom_call.1} parent=0 // pred_check
    _
  $region3: #{tpu_custom_call.1} parent=0 // pred_check_branch
    %15 = sbr.rel (0) target = $region5
  $region4: #{tpu_custom_call.1} parent=0 // pred_region
    _
  $region5: #{tpu_custom_call.1} parent=0 // pred_fallthru
    _
  // Predicated region
  $region6: #{tpu_custom_call.1} parent=0 // pred_check
    _
  $region7: #{tpu_custom_call.1} parent=0 // pred_check_branch
    %17 = sbr.rel (0) target = $region9
  $region8: #{tpu_custom_call.1} parent=0 // pred_region
    _
  $region9: #{tpu_custom_call.1} parent=0 // pred_fallthru
    _
  // Predicated region
  $region10: #{tpu_custom_call.1} parent=0 // pred_check
    _
  $region11: #{tpu_custom_call.1} parent=0 // pred_check_branch
    %19 = sbr.rel (0) target = $region13
  $region12: #{tpu_custom_call.1} parent=0 // pred_region
    _
  $region13: #{tpu_custom_call.1} parent=0 // pred_fallthru
    _
  // Predicated region
  $region14: #{tpu_custom_call.1} parent=0 // pred_check
    _
  $region15: #{tpu_custom_call.1} parent=0 // pred_check_branch
    %21 = sbr.rel (0) target = $region17
  $region16: #{tpu_custom_call.1} parent=0 // pred_region
    _
  $region17: #{tpu_custom_call.1} parent=0 // pred_fallthru
    _
  // Predicated region
  $region18: #{tpu_custom_call.1} parent=0 // pred_check
    _
  $region19: #{tpu_custom_call.1} parent=0 // pred_check_branch
    %23 = sbr.rel (0) target = $region21
  $region20: #{tpu_custom_call.1} parent=0 // pred_region
    _
  $region21: #{tpu_custom_call.1} parent=0 // pred_fallthru
    _
  // Predicated region
  $region22: #{tpu_custom_call.1} parent=0 // pred_check
    _
  $region23: #{tpu_custom_call.1} parent=0 // pred_check_branch
    %25 = sbr.rel (0) target = $region25
  $region24: #{tpu_custom_call.1} parent=0 // pred_region
    _
  $region25: #{tpu_custom_call.1} parent=0 // pred_fallthru
    _
  // Predicated region
  $region26: #{tpu_custom_call.1} parent=0 // pred_check
    _
  $region27: #{tpu_custom_call.1} parent=0 // pred_check_branch
    %27 = sbr.rel (0) target = $region29
  $region28: #{tpu_custom_call.1} parent=0 // pred_region
    _
  $region29: #{tpu_custom_call.1} parent=0 // pred_fallthru
    _
  // Predicated region
  $region30: #{tpu_custom_call.1} parent=0 // pred_check
    _
  $region31: #{tpu_custom_call.1} parent=0 // pred_check_branch
    %29 = sbr.rel (0) target = $region33
  $region32: #{tpu_custom_call.1} parent=0 // pred_region
    _
  $region33: #{tpu_custom_call.1} parent=0 // pred_fallthru
    _
  // Predicated region
  $region34: #{tpu_custom_call.1} parent=0 // pred_check
    _
  $region35: #{tpu_custom_call.1} parent=0 // pred_check_branch
    %31 = sbr.rel (0) target = $region37
  $region36: #{tpu_custom_call.1} parent=0 // pred_region
    _
  $region37: #{tpu_custom_call.1} parent=0 // pred_fallthru
    _
  %v32 = vld [vmem:[%s0] sm:$0xff]
  %v33 = vld [vmem:[%s0 + $0x8] sm:$0xff]
  %v34 = vld [vmem:[%s0 + $0x10] sm:$0xff]
  %v35 = vld [vmem:[%s0 + $0x18] sm:$0xff]
  %v36 = vld [vmem:[%s0 + $0x20] sm:$0xff]
  %v37 = vld [vmem:[%s0 + $0x28] sm:$0xff]
  %v38 = vld [vmem:[%s0 + $0x30] sm:$0xff]
  %v39 = vld [vmem:[%s0 + $0x38] sm:$0xff]
  %v40 = vld [vmem:[%s0 + $0x40] sm:$0xff]
  %v41 = vld [vmem:[%s0 + $0x48] sm:$0xff]
  %v42 = vld [vmem:[%s0 + $0x50] sm:$0xff]
  %v43 = vld [vmem:[%s0 + $0x58] sm:$0xff]
  %v44 = vld [vmem:[%s0 + $0x60] sm:$0xff]
  %v45 = vld [vmem:[%s0 + $0x68] sm:$0xff]
  %v46 = vld [vmem:[%s0 + $0x70] sm:$0xff]
  %v47 = vld [vmem:[%s0 + $0x78] sm:$0xff]
  %v48 = vld [vmem:[%s0 + $0x80] sm:$0xff]
  %v49 = vld [vmem:[%s0 + $0x88] sm:$0xff]
  %v50 = vld [vmem:[%s0 + $0x90] sm:$0xff]
  %v51 = vld [vmem:[%s0 + $0x98] sm:$0xff]
  %v52 = vld [vmem:[%s0 + $0xa0] sm:$0xff]
  %v53 = vld [vmem:[%s0 + $0xa8] sm:$0xff]
  %v54 = vld [vmem:[%s0 + $0xb0] sm:$0xff]
  %v55 = vld [vmem:[%s0 + $0xb8] sm:$0xff]
  %v56 = vld [vmem:[%s0 + $0xc0] sm:$0xff]
  %v57 = vld [vmem:[%s0 + $0xc8] sm:$0xff]
  %v58 = vld [vmem:[%s0 + $0xd0] sm:$0xff]
  %v59 = vld [vmem:[%s0 + $0xd8] sm:$0xff]
  %v60 = vld [vmem:[%s0 + $0xe0] sm:$0xff]
  %v61 = vld [vmem:[%s0 + $0xe8] sm:$0xff]
  %v62 = vld [vmem:[%s0 + $0xf0] sm:$0xff]
  %v63 = vld [vmem:[%s0 + $0xf8] sm:$0xff]
  %v64 = vld [vmem:[%s0 + $0x100] sm:$0xff]
  %v65 = vld [vmem:[%s0 + $0x108] sm:$0xff]
  %v66 = vld [vmem:[%s0 + $0x110] sm:$0xff]
  %v67 = vld [vmem:[%s0 + $0x118] sm:$0xff]
  %v68 = vld [vmem:[%s0 + $0x120] sm:$0xff]
  %v69 = vld [vmem:[%s0 + $0x128] sm:$0xf]
  %v70 = vld [vmem:[%s1] sm:$0xff]
  %v71 = vld [vmem:[%s1 + $0x8] sm:$0xff]
  %v72 = vld [vmem:[%s1 + $0x10] sm:$0xff]
  %v73 = vld [vmem:[%s1 + $0x18] sm:$0xff]
  %v74 = vld [vmem:[%s2] sm:$0xff]
  %v75 = vld [vmem:[%s2 + $0x8] sm:$0xff]
  %v76 = vld [vmem:[%s2 + $0x10] sm:$0xff]
  %v77 = vld [vmem:[%s2 + $0x18] sm:$0xff]
  %79 = vset.pattern.permute.xlu0 0
  %80 = vperm.xlu0 %79, %v74
  %v81 = vpop.permute.xlu0 %80
  %84 = vset.pattern.permute.xlu0 0
  %85 = vperm.xlu0 %84, %v75
  %v86 = vpop.permute.xlu0 %85
  %89 = vset.pattern.permute.xlu0 0
  %90 = vperm.xlu0 %89, %v76
  %v91 = vpop.permute.xlu0 %90
  %94 = vset.pattern.permute.xlu0 0
  %95 = vperm.xlu0 %94, %v77
  %v96 = vpop.permute.xlu0 %95
  %vm98 = vcmask 130048
  %v100 = vsel %vm98, %v70, 0
  %v103 = vsel %vm98, %v71, 0
  %v106 = vsel %vm98, %v72, 0
  %v109 = vsel %vm98, %v73, 0
  %v112 = vsel %vm98, %v32, 0
  %v115 = vsel %vm98, %v33, 0
  %v118 = vsel %vm98, %v34, 0
  %v121 = vsel %vm98, %v35, 0
  %v124 = vsel %vm98, %v36, 0
  %v127 = vsel %vm98, %v37, 0
  %v130 = vsel %vm98, %v38, 0
  %v133 = vsel %vm98, %v39, 0
  %v136 = vsel %vm98, %v40, 0
  %v139 = vsel %vm98, %v41, 0
  %v142 = vsel %vm98, %v42, 0
  %v145 = vsel %vm98, %v43, 0
  %v148 = vsel %vm98, %v44, 0
  %v151 = vsel %vm98, %v45, 0
  %v154 = vsel %vm98, %v46, 0
  %v157 = vsel %vm98, %v47, 0
  %v160 = vsel %vm98, %v48, 0
  %v163 = vsel %vm98, %v49, 0
  %v166 = vsel %vm98, %v50, 0
  %v169 = vsel %vm98, %v51, 0
  %v172 = vsel %vm98, %v52, 0
  %v175 = vsel %vm98, %v53, 0
  %v178 = vsel %vm98, %v54, 0
  %v181 = vsel %vm98, %v55, 0
  %v184 = vsel %vm98, %v56, 0
  %v187 = vsel %vm98, %v57, 0
  %v190 = vsel %vm98, %v58, 0
  %v193 = vsel %vm98, %v59, 0
  %v196 = vsel %vm98, %v60, 0
  %v199 = vsel %vm98, %v61, 0
  %v202 = vsel %vm98, %v62, 0
  %v205 = vsel %vm98, %v63, 0
  %v208 = vsel %vm98, %v64, 0
  %v211 = vsel %vm98, %v65, 0
  %v214 = vsel %vm98, %v66, 0
  %v217 = vsel %vm98, %v67, 0
  %v220 = vsel %vm98, %v68, 0
  %v223 = vsel %vm98, %v69, 0
  %225 = vmatprep.subr.mxu0 0.0
  %226 = vmatpush1.xpose.msra.mxu0 %v157
  %227 = vmatprep.subr.mxu0 0.0
  %228 = vmatpush1.xpose.msra.mxu0 %v154
  %229 = vmatprep.subr.mxu0 0.0
  %230 = vmatpush1.xpose.msra.mxu0 %v151
  %231 = vmatprep.subr.mxu0 0.0
  %232 = vmatpush1.xpose.msra.mxu0 %v148
  %233 = vmatprep.subr.mxu0 0.0
  %234 = vmatpush1.xpose.msra.mxu0 %v145
  %235 = vmatprep.subr.mxu0 0.0
  %236 = vmatpush1.xpose.msra.mxu0 %v142
  %237 = vmatprep.subr.mxu0 0.0
  %238 = vmatpush1.xpose.msra.mxu0 %v139
  %239 = vmatprep.subr.mxu0 0.0
  %240 = vmatpush1.xpose.msra.mxu0 %v136
  %241 = vmatprep.subr.mxu0 0.0
  %242 = vmatpush1.xpose.msra.mxu0 %v133
  %243 = vmatprep.subr.mxu0 0.0
  %244 = vmatpush1.xpose.msra.mxu0 %v130
  %245 = vmatprep.subr.mxu0 0.0
  %246 = vmatpush1.xpose.msra.mxu0 %v127
  %247 = vmatprep.subr.mxu0 0.0
  %248 = vmatpush1.xpose.msra.mxu0 %v124
  %249 = vmatprep.subr.mxu0 0.0
  %250 = vmatpush1.xpose.msra.mxu0 %v121
  %251 = vmatprep.subr.mxu0 0.0
  %252 = vmatpush1.xpose.msra.mxu0 %v118
  %253 = vmatprep.subr.mxu0 0.0
  %254 = vmatpush1.xpose.msra.mxu0 %v115
  %255 = vmatprep.subr.mxu0 0.0
  %256 = vmatpush1.xpose.msra.mxu0 %v112
  %257 = vmatprep.subr.mxu0 0.0
  %258 = vmatpush2.xpose.msra.mxu0 %v205
  %259 = vmatprep.subr.mxu0 0.0
  %260 = vmatpush2.xpose.msra.mxu0 %v202
  %261 = vmatprep.subr.mxu0 0.0
  %262 = vmatpush2.xpose.msra.mxu0 %v199
  %263 = vmatprep.subr.mxu0 0.0
  %264 = vmatpush2.xpose.msra.mxu0 %v196
  %265 = vmatprep.subr.mxu0 0.0
  %266 = vmatpush2.xpose.msra.mxu0 %v193
  %267 = vmatprep.subr.mxu0 0.0
  %268 = vmatpush2.xpose.msra.mxu0 %v190
  %269 = vmatprep.subr.mxu0 0.0
  %270 = vmatpush2.xpose.msra.mxu0 %v187
  %271 = vmatprep.subr.mxu0 0.0
  %272 = vmatpush2.xpose.msra.mxu0 %v184
  %273 = vmatprep.subr.mxu0 0.0
  %274 = vmatpush2.xpose.msra.mxu0 %v181
  %275 = vmatprep.subr.mxu0 0.0
  %276 = vmatpush2.xpose.msra.mxu0 %v178
  %277 = vmatprep.subr.mxu0 0.0
  %278 = vmatpush2.xpose.msra.mxu0 %v175
  %279 = vmatprep.subr.mxu0 0.0
  %280 = vmatpush2.xpose.msra.mxu0 %v172
  %281 = vmatprep.subr.mxu0 0.0
  %282 = vmatpush2.xpose.msra.mxu0 %v169
  %283 = vmatprep.subr.mxu0 0.0
  %284 = vmatpush2.xpose.msra.mxu0 %v166
  %285 = vmatprep.subr.mxu0 0.0
  %286 = vmatpush2.xpose.msra.mxu0 %v163
  %287 = vmatprep.subr.mxu0 0.0
  %288 = vmatpush2.xpose.msra.mxu0 %v160
  %289 = vmatprep.mubr.f32.mxu0 0.0
  %290 = vmatmul.mubr.f32.gmra.mxu0 %v100
  %v291 = vpop.f32.mrf.mxu0
  %v292 = vadd.f32 %v81, %v291
  %v293 = vpop.f32.mrf.mxu0
  %v294 = vadd.f32 %v81, %v293
  %295 = vmatprep.mubr.f32.mxu0 0.0
  %296 = vmatmul.mubr.f32.gmra.mxu0 %v103
  %v297 = vpop.f32.mrf.mxu0
  %v298 = vadd.f32 %v86, %v297
  %v299 = vpop.f32.mrf.mxu0
  %v300 = vadd.f32 %v86, %v299
  %301 = vmatprep.mubr.f32.mxu0 0.0
  %302 = vmatmul.mubr.f32.gmra.mxu0 %v106
  %v303 = vpop.f32.mrf.mxu0
  %v304 = vadd.f32 %v91, %v303
  %v305 = vpop.f32.mrf.mxu0
  %v306 = vadd.f32 %v91, %v305
  %307 = vmatprep.mubr.f32.mxu0 0.0
  %308 = vmatmul.mubr.f32.gmra.mxu0 %v109
  %v309 = vpop.f32.mrf.mxu0
  %v310 = vadd.f32 %v96, %v309
  %v311 = vpop.f32.mrf.mxu0
  %v312 = vadd.f32 %v96, %v311
  %313 = vdwg.mxu0
  %314 = vmatprep.subr.mxu0 0.0
  %315 = vmatpush1.xpose.msra.mxu0 0.0
  %316 = vmatprep.subr.mxu0 0.0
  %317 = vmatpush1.xpose.msra.mxu0 0.0
  %318 = vmatprep.subr.mxu0 0.0
  %319 = vmatpush1.xpose.msra.mxu0 0.0
  %320 = vmatprep.subr.mxu0 0.0
  %321 = vmatpush1.xpose.msra.mxu0 0.0
  %322 = vmatprep.subr.mxu0 0.0
  %323 = vmatpush1.xpose.msra.mxu0 0.0
  %324 = vmatprep.subr.mxu0 0.0
  %325 = vmatpush1.xpose.msra.mxu0 0.0
  %326 = vmatprep.subr.mxu0 0.0
  %327 = vmatpush1.xpose.msra.mxu0 0.0
  %328 = vmatprep.subr.mxu0 0.0
  %329 = vmatpush1.xpose.msra.mxu0 0.0
  %330 = vmatprep.subr.mxu0 0.0
  %331 = vmatpush1.xpose.msra.mxu0 0.0
  %332 = vmatprep.subr.mxu0 0.0
  %333 = vmatpush1.xpose.msra.mxu0 0.0
  %334 = vmatprep.subr.mxu0 0.0
  %335 = vmatpush1.xpose.msra.mxu0 %v223
  %336 = vmatprep.subr.mxu0 0.0
  %337 = vmatpush1.xpose.msra.mxu0 %v220
  %338 = vmatprep.subr.mxu0 0.0
  %339 = vmatpush1.xpose.msra.mxu0 %v217
  %340 = vmatprep.subr.mxu0 0.0
  %341 = vmatpush1.xpose.msra.mxu0 %v214
  %342 = vmatprep.subr.mxu0 0.0
  %343 = vmatpush1.xpose.msra.mxu0 %v211
  %344 = vmatprep.subr.mxu0 0.0
  %345 = vmatpush1.xpose.msra.mxu0 %v208
  %346 = vmatprep.subr.mxu0 0.0
  %347 = vmatpush2.xpose.msra.mxu0 0.0
  %348 = vmatprep.subr.mxu0 0.0
  %349 = vmatpush2.xpose.msra.mxu0 0.0
  %350 = vmatprep.subr.mxu0 0.0
  %351 = vmatpush2.xpose.msra.mxu0 0.0
  %352 = vmatprep.subr.mxu0 0.0
  %353 = vmatpush2.xpose.msra.mxu0 0.0
  %354 = vmatprep.subr.mxu0 0.0
  %355 = vmatpush2.xpose.msra.mxu0 0.0
  %356 = vmatprep.subr.mxu0 0.0
  %357 = vmatpush2.xpose.msra.mxu0 0.0
  %358 = vmatprep.subr.mxu0 0.0
  %359 = vmatpush2.xpose.msra.mxu0 0.0
  %360 = vmatprep.subr.mxu0 0.0
  %361 = vmatpush2.xpose.msra.mxu0 0.0
  %362 = vmatprep.subr.mxu0 0.0
  %363 = vmatpush2.xpose.msra.mxu0 0.0
  %364 = vmatprep.subr.mxu0 0.0
  %365 = vmatpush2.xpose.msra.mxu0 0.0
  %366 = vmatprep.subr.mxu0 0.0
  %367 = vmatpush2.xpose.msra.mxu0 0.0
  %368 = vmatprep.subr.mxu0 0.0
  %369 = vmatpush2.xpose.msra.mxu0 0.0
  %370 = vmatprep.subr.mxu0 0.0
  %371 = vmatpush2.xpose.msra.mxu0 0.0
  %372 = vmatprep.subr.mxu0 0.0
  %373 = vmatpush2.xpose.msra.mxu0 0.0
  %374 = vmatprep.subr.mxu0 0.0
  %375 = vmatpush2.xpose.msra.mxu0 0.0
  %376 = vmatprep.subr.mxu0 0.0
  %377 = vmatpush2.xpose.msra.mxu0 0.0
  %378 = vmatprep.mubr.f32.mxu0 0.0
  %379 = vmatmul.mubr.f32.gmra.mxu0 %v100
  %v380 = vpop.f32.mrf.mxu0
  %v381 = vadd.f32 %v81, %v380
  %v382 = vpop.f32.mrf.mxu0
  %383 = vmatprep.mubr.f32.mxu0 0.0
  %384 = vmatmul.mubr.f32.gmra.mxu0 %v103
  %v385 = vpop.f32.mrf.mxu0
  %v386 = vadd.f32 %v86, %v385
  %v387 = vpop.f32.mrf.mxu0
  %388 = vmatprep.mubr.f32.mxu0 0.0
  %389 = vmatmul.mubr.f32.gmra.mxu0 %v106
  %v390 = vpop.f32.mrf.mxu0
  %v391 = vadd.f32 %v91, %v390
  %v392 = vpop.f32.mrf.mxu0
  %393 = vmatprep.mubr.f32.mxu0 0.0
  %394 = vmatmul.mubr.f32.gmra.mxu0 %v109
  %v395 = vpop.f32.mrf.mxu0
  %v396 = vadd.f32 %v96, %v395
  %v397 = vpop.f32.mrf.mxu0
  %398 = vdwg.mxu0
  %v399 = vmax.f32 %v292, 0.0
  %v400 = vmax.f32 %v294, 0.0
  %v401 = vmax.f32 %v381, 0.0
  %v402 = vmax.f32 %v298, 0.0
  %v403 = vmax.f32 %v300, 0.0
  %v404 = vmax.f32 %v386, 0.0
  %v405 = vmax.f32 %v304, 0.0
  %v406 = vmax.f32 %v306, 0.0
  %v407 = vmax.f32 %v391, 0.0
  %v408 = vmax.f32 %v310, 0.0
  %v409 = vmax.f32 %v312, 0.0
  %v410 = vmax.f32 %v396, 0.0
  %v411 = vld [vmem:[%s3] sm:$0xff]
  %v412 = vld [vmem:[%s3 + $0x8] sm:$0xff]
  %v413 = vld [vmem:[%s3 + $0x10] sm:$0xff]
  %v414 = vld [vmem:[%s3 + $0x18] sm:$0xff]
  %v415 = vld [vmem:[%s4] sm:$0xff]
  %v416 = vld [vmem:[%s4 + $0x8] sm:$0xff]
  %v417 = vld [vmem:[%s4 + $0x10] sm:$0xff]
  %v418 = vld [vmem:[%s4 + $0x18] sm:$0xff]
  %420 = vset.pattern.permute.xlu0 0
  %421 = vperm.xlu0 %420, %v415
  %v422 = vpop.permute.xlu0 %421
  %425 = vset.pattern.permute.xlu0 0
  %426 = vperm.xlu0 %425, %v416
  %v427 = vpop.permute.xlu0 %426
  %430 = vset.pattern.permute.xlu0 0
  %431 = vperm.xlu0 %430, %v417
  %v432 = vpop.permute.xlu0 %431
  %435 = vset.pattern.permute.xlu0 0
  %436 = vperm.xlu0 %435, %v418
  %v437 = vpop.permute.xlu0 %436
  %vm439 = vcmask 261120
  %v441 = vsel %vm439, %v411, 0
  %v444 = vsel %vm439, %v412, 0
  %v447 = vsel %vm439, %v413, 0
  %v450 = vsel %vm439, %v414, 0
  %452 = vmatprep.subr.mxu0 0.0
  %453 = vmatpush1.msra.mxu0 0.0
  %454 = vmatprep.subr.mxu0 0.0
  %455 = vmatpush1.msra.mxu0 0.0
  %456 = vmatprep.subr.mxu0 0.0
  %457 = vmatpush1.msra.mxu0 0.0
  %458 = vmatprep.subr.mxu0 0.0
  %459 = vmatpush1.msra.mxu0 0.0
  %460 = vmatprep.subr.mxu0 0.0
  %461 = vmatpush1.msra.mxu0 0.0
  %462 = vmatprep.subr.mxu0 0.0
  %463 = vmatpush1.msra.mxu0 0.0
  %464 = vmatprep.subr.mxu0 0.0
  %465 = vmatpush1.msra.mxu0 0.0
  %466 = vmatprep.subr.mxu0 0.0
  %467 = vmatpush1.msra.mxu0 0.0
  %468 = vmatprep.subr.mxu0 0.0
  %469 = vmatpush1.msra.mxu0 0.0
  %470 = vmatprep.subr.mxu0 0.0
  %471 = vmatpush1.msra.mxu0 0.0
  %472 = vmatprep.subr.mxu0 0.0
  %473 = vmatpush1.msra.mxu0 0.0
  %474 = vmatprep.subr.mxu0 0.0
  %475 = vmatpush1.msra.mxu0 0.0
  %476 = vmatprep.subr.mxu0 %v409
  %477 = vmatpush1.msra.mxu0 %v408
  %478 = vmatprep.subr.mxu0 %v406
  %479 = vmatpush1.msra.mxu0 %v405
  %480 = vmatprep.subr.mxu0 %v403
  %481 = vmatpush1.msra.mxu0 %v402
  %482 = vmatprep.subr.mxu0 %v400
  %483 = vmatpush1.msra.mxu0 %v399
  %484 = vmatprep.subr.mxu0 0.0
  %485 = vmatpush2.msra.mxu0 0.0
  %486 = vmatprep.subr.mxu0 0.0
  %487 = vmatpush2.msra.mxu0 0.0
  %488 = vmatprep.subr.mxu0 0.0
  %489 = vmatpush2.msra.mxu0 0.0
  %490 = vmatprep.subr.mxu0 0.0
  %491 = vmatpush2.msra.mxu0 0.0
  %492 = vmatprep.subr.mxu0 0.0
  %493 = vmatpush2.msra.mxu0 0.0
  %494 = vmatprep.subr.mxu0 0.0
  %495 = vmatpush2.msra.mxu0 0.0
  %496 = vmatprep.subr.mxu0 0.0
  %497 = vmatpush2.msra.mxu0 0.0
  %498 = vmatprep.subr.mxu0 0.0
  %499 = vmatpush2.msra.mxu0 0.0
  %500 = vmatprep.subr.mxu0 0.0
  %501 = vmatpush2.msra.mxu0 0.0
  %502 = vmatprep.subr.mxu0 0.0
  %503 = vmatpush2.msra.mxu0 0.0
  %504 = vmatprep.subr.mxu0 0.0
  %505 = vmatpush2.msra.mxu0 0.0
  %506 = vmatprep.subr.mxu0 0.0
  %507 = vmatpush2.msra.mxu0 0.0
  %508 = vmatprep.subr.mxu0 0.0
  %509 = vmatpush2.msra.mxu0 0.0
  %510 = vmatprep.subr.mxu0 0.0
  %511 = vmatpush2.msra.mxu0 0.0
  %512 = vmatprep.subr.mxu0 0.0
  %513 = vmatpush2.msra.mxu0 0.0
  %514 = vmatprep.subr.mxu0 0.0
  %515 = vmatpush2.msra.mxu0 0.0
  %516 = vmatprep.mubr.f32.mxu0 0.0
  %517 = vmatmul.mubr.f32.gmra.mxu0 %v441
  %v518 = vpop.f32.mrf.mxu0
  %v519 = vadd.f32 %v422, %v518
  %v520 = vpop.f32.mrf.mxu0
  %v521 = vadd.f32 %v422, %v520
  %522 = vmatprep.mubr.f32.mxu0 0.0
  %523 = vmatmul.mubr.f32.gmra.mxu0 %v444
  %v524 = vpop.f32.mrf.mxu0
  %v525 = vadd.f32 %v427, %v524
  %v526 = vpop.f32.mrf.mxu0
  %v527 = vadd.f32 %v427, %v526
  %528 = vmatprep.mubr.f32.mxu0 0.0
  %529 = vmatmul.mubr.f32.gmra.mxu0 %v447
  %v530 = vpop.f32.mrf.mxu0
  %v531 = vadd.f32 %v432, %v530
  %v532 = vpop.f32.mrf.mxu0
  %v533 = vadd.f32 %v432, %v532
  %534 = vmatprep.mubr.f32.mxu0 0.0
  %535 = vmatmul.mubr.f32.gmra.mxu0 %v450
  %v536 = vpop.f32.mrf.mxu0
  %v537 = vadd.f32 %v437, %v536
  %v538 = vpop.f32.mrf.mxu0
  %v539 = vadd.f32 %v437, %v538
  %540 = vdwg.mxu0
  %541 = vmatprep.subr.mxu0 0.0
  %542 = vmatpush1.msra.mxu0 0.0
  %543 = vmatprep.subr.mxu0 0.0
  %544 = vmatpush1.msra.mxu0 0.0
  %545 = vmatprep.subr.mxu0 0.0
  %546 = vmatpush1.msra.mxu0 0.0
  %547 = vmatprep.subr.mxu0 0.0
  %548 = vmatpush1.msra.mxu0 0.0
  %549 = vmatprep.subr.mxu0 0.0
  %550 = vmatpush1.msra.mxu0 0.0
  %551 = vmatprep.subr.mxu0 0.0
  %552 = vmatpush1.msra.mxu0 0.0
  %553 = vmatprep.subr.mxu0 0.0
  %554 = vmatpush1.msra.mxu0 0.0
  %555 = vmatprep.subr.mxu0 0.0
  %556 = vmatpush1.msra.mxu0 0.0
  %557 = vmatprep.subr.mxu0 0.0
  %558 = vmatpush1.msra.mxu0 0.0
  %559 = vmatprep.subr.mxu0 0.0
  %560 = vmatpush1.msra.mxu0 0.0
  %561 = vmatprep.subr.mxu0 0.0
  %562 = vmatpush1.msra.mxu0 0.0
  %563 = vmatprep.subr.mxu0 0.0
  %564 = vmatpush1.msra.mxu0 0.0
  %565 = vmatprep.subr.mxu0 0.0
  %566 = vmatpush1.msra.mxu0 %v410
  %567 = vmatprep.subr.mxu0 0.0
  %568 = vmatpush1.msra.mxu0 %v407
  %569 = vmatprep.subr.mxu0 0.0
  %570 = vmatpush1.msra.mxu0 %v404
  %571 = vmatprep.subr.mxu0 0.0
  %572 = vmatpush1.msra.mxu0 %v401
  %573 = vmatprep.subr.mxu0 0.0
  %574 = vmatpush2.msra.mxu0 0.0
  %575 = vmatprep.subr.mxu0 0.0
  %576 = vmatpush2.msra.mxu0 0.0
  %577 = vmatprep.subr.mxu0 0.0
  %578 = vmatpush2.msra.mxu0 0.0
  %579 = vmatprep.subr.mxu0 0.0
  %580 = vmatpush2.msra.mxu0 0.0
  %581 = vmatprep.subr.mxu0 0.0
  %582 = vmatpush2.msra.mxu0 0.0
  %583 = vmatprep.subr.mxu0 0.0
  %584 = vmatpush2.msra.mxu0 0.0
  %585 = vmatprep.subr.mxu0 0.0
  %586 = vmatpush2.msra.mxu0 0.0
  %587 = vmatprep.subr.mxu0 0.0
  %588 = vmatpush2.msra.mxu0 0.0
  %589 = vmatprep.subr.mxu0 0.0
  %590 = vmatpush2.msra.mxu0 0.0
  %591 = vmatprep.subr.mxu0 0.0
  %592 = vmatpush2.msra.mxu0 0.0
  %593 = vmatprep.subr.mxu0 0.0
  %594 = vmatpush2.msra.mxu0 0.0
  %595 = vmatprep.subr.mxu0 0.0
  %596 = vmatpush2.msra.mxu0 0.0
  %597 = vmatprep.subr.mxu0 0.0
  %598 = vmatpush2.msra.mxu0 0.0
  %599 = vmatprep.subr.mxu0 0.0
  %600 = vmatpush2.msra.mxu0 0.0
  %601 = vmatprep.subr.mxu0 0.0
  %602 = vmatpush2.msra.mxu0 0.0
  %603 = vmatprep.subr.mxu0 0.0
  %604 = vmatpush2.msra.mxu0 0.0
  %605 = vmatprep.mubr.f32.mxu0 0.0
  %606 = vmatmul.mubr.f32.gmra.mxu0 %v441
  %v607 = vpop.f32.mrf.mxu0
  %v608 = vadd.f32 %v422, %v607
  %v609 = vpop.f32.mrf.mxu0
  %610 = vmatprep.mubr.f32.mxu0 0.0
  %611 = vmatmul.mubr.f32.gmra.mxu0 %v444
  %v612 = vpop.f32.mrf.mxu0
  %v613 = vadd.f32 %v427, %v612
  %v614 = vpop.f32.mrf.mxu0
  %615 = vmatprep.mubr.f32.mxu0 0.0
  %616 = vmatmul.mubr.f32.gmra.mxu0 %v447
  %v617 = vpop.f32.mrf.mxu0
  %v618 = vadd.f32 %v432, %v617
  %v619 = vpop.f32.mrf.mxu0
  %620 = vmatprep.mubr.f32.mxu0 0.0
  %621 = vmatmul.mubr.f32.gmra.mxu0 %v450
  %v622 = vpop.f32.mrf.mxu0
  %v623 = vadd.f32 %v437, %v622
  %v624 = vpop.f32.mrf.mxu0
  %625 = vdwg.mxu0
  %v626 = vmax.f32 %v519, 0.0
  %v627 = vmax.f32 %v521, 0.0
  %v628 = vmax.f32 %v608, 0.0
  %v629 = vmax.f32 %v525, 0.0
  %v630 = vmax.f32 %v527, 0.0
  %v631 = vmax.f32 %v613, 0.0
  %v632 = vmax.f32 %v531, 0.0
  %v633 = vmax.f32 %v533, 0.0
  %v634 = vmax.f32 %v618, 0.0
  %v635 = vmax.f32 %v537, 0.0
  %v636 = vmax.f32 %v539, 0.0
  %v637 = vmax.f32 %v623, 0.0
  %v638 = vld [vmem:[%s5] sm:$0xff]
  %v639 = vld [vmem:[%s5 + $0x8] sm:$0xff]
  %v640 = vld [vmem:[%s5 + $0x10] sm:$0xff]
  %v641 = vld [vmem:[%s5 + $0x18] sm:$0xff]
  %v642 = vld [vmem:[%s6] sm:$0xff]
  %v643 = vld [vmem:[%s6 + $0x8] sm:$0xff]
  %v644 = vld [vmem:[%s6 + $0x10] sm:$0xff]
  %v645 = vld [vmem:[%s6 + $0x18] sm:$0xff]
  %647 = vset.pattern.permute.xlu0 0
  %648 = vperm.xlu0 %647, %v642
  %v649 = vpop.permute.xlu0 %648
  %652 = vset.pattern.permute.xlu0 0
  %653 = vperm.xlu0 %652, %v643
  %v654 = vpop.permute.xlu0 %653
  %657 = vset.pattern.permute.xlu0 0
  %658 = vperm.xlu0 %657, %v644
  %v659 = vpop.permute.xlu0 %658
  %662 = vset.pattern.permute.xlu0 0
  %663 = vperm.xlu0 %662, %v645
  %v664 = vpop.permute.xlu0 %663
  %v667 = vsel %vm439, %v638, 0
  %v670 = vsel %vm439, %v639, 0
  %v673 = vsel %vm439, %v640, 0
  %v676 = vsel %vm439, %v641, 0
  %678 = vmatprep.subr.mxu0 0.0
  %679 = vmatpush1.msra.mxu0 0.0
  %680 = vmatprep.subr.mxu0 0.0
  %681 = vmatpush1.msra.mxu0 0.0
  %682 = vmatprep.subr.mxu0 0.0
  %683 = vmatpush1.msra.mxu0 0.0
  %684 = vmatprep.subr.mxu0 0.0
  %685 = vmatpush1.msra.mxu0 0.0
  %686 = vmatprep.subr.mxu0 0.0
  %687 = vmatpush1.msra.mxu0 0.0
  %688 = vmatprep.subr.mxu0 0.0
  %689 = vmatpush1.msra.mxu0 0.0
  %690 = vmatprep.subr.mxu0 0.0
  %691 = vmatpush1.msra.mxu0 0.0
  %692 = vmatprep.subr.mxu0 0.0
  %693 = vmatpush1.msra.mxu0 0.0
  %694 = vmatprep.subr.mxu0 0.0
  %695 = vmatpush1.msra.mxu0 0.0
  %696 = vmatprep.subr.mxu0 0.0
  %697 = vmatpush1.msra.mxu0 0.0
  %698 = vmatprep.subr.mxu0 0.0
  %699 = vmatpush1.msra.mxu0 0.0
  %700 = vmatprep.subr.mxu0 0.0
  %701 = vmatpush1.msra.mxu0 0.0
  %702 = vmatprep.subr.mxu0 %v636
  %703 = vmatpush1.msra.mxu0 %v635
  %704 = vmatprep.subr.mxu0 %v633
  %705 = vmatpush1.msra.mxu0 %v632
  %706 = vmatprep.subr.mxu0 %v630
  %707 = vmatpush1.msra.mxu0 %v629
  %708 = vmatprep.subr.mxu0 %v627
  %709 = vmatpush1.msra.mxu0 %v626
  %710 = vmatprep.subr.mxu0 0.0
  %711 = vmatpush2.msra.mxu0 0.0
  %712 = vmatprep.subr.mxu0 0.0
  %713 = vmatpush2.msra.mxu0 0.0
  %714 = vmatprep.subr.mxu0 0.0
  %715 = vmatpush2.msra.mxu0 0.0
  %716 = vmatprep.subr.mxu0 0.0
  %717 = vmatpush2.msra.mxu0 0.0
  %718 = vmatprep.subr.mxu0 0.0
  %719 = vmatpush2.msra.mxu0 0.0
  %720 = vmatprep.subr.mxu0 0.0
  %721 = vmatpush2.msra.mxu0 0.0
  %722 = vmatprep.subr.mxu0 0.0
  %723 = vmatpush2.msra.mxu0 0.0
  %724 = vmatprep.subr.mxu0 0.0
  %725 = vmatpush2.msra.mxu0 0.0
  %726 = vmatprep.subr.mxu0 0.0
  %727 = vmatpush2.msra.mxu0 0.0
  %728 = vmatprep.subr.mxu0 0.0
  %729 = vmatpush2.msra.mxu0 0.0
  %730 = vmatprep.subr.mxu0 0.0
  %731 = vmatpush2.msra.mxu0 0.0
  %732 = vmatprep.subr.mxu0 0.0
  %733 = vmatpush2.msra.mxu0 0.0
  %734 = vmatprep.subr.mxu0 0.0
  %735 = vmatpush2.msra.mxu0 0.0
  %736 = vmatprep.subr.mxu0 0.0
  %737 = vmatpush2.msra.mxu0 0.0
  %738 = vmatprep.subr.mxu0 0.0
  %739 = vmatpush2.msra.mxu0 0.0
  %740 = vmatprep.subr.mxu0 0.0
  %741 = vmatpush2.msra.mxu0 0.0
  %742 = vmatprep.mubr.f32.mxu0 0.0
  %743 = vmatmul.mubr.f32.gmra.mxu0 %v667
  %v744 = vpop.f32.mrf.mxu0
  %v745 = vadd.f32 %v649, %v744
  %v746 = vpop.f32.mrf.mxu0
  %v747 = vadd.f32 %v649, %v746
  %748 = vmatprep.mubr.f32.mxu0 0.0
  %749 = vmatmul.mubr.f32.gmra.mxu0 %v670
  %v750 = vpop.f32.mrf.mxu0
  %v751 = vadd.f32 %v654, %v750
  %v752 = vpop.f32.mrf.mxu0
  %v753 = vadd.f32 %v654, %v752
  %754 = vmatprep.mubr.f32.mxu0 0.0
  %755 = vmatmul.mubr.f32.gmra.mxu0 %v673
  %v756 = vpop.f32.mrf.mxu0
  %v757 = vadd.f32 %v659, %v756
  %v758 = vpop.f32.mrf.mxu0
  %v759 = vadd.f32 %v659, %v758
  %760 = vmatprep.mubr.f32.mxu0 0.0
  %761 = vmatmul.mubr.f32.gmra.mxu0 %v676
  %v762 = vpop.f32.mrf.mxu0
  %v763 = vadd.f32 %v664, %v762
  %v764 = vpop.f32.mrf.mxu0
  %v765 = vadd.f32 %v664, %v764
  %766 = vdwg.mxu0
  %767 = vmatprep.subr.mxu0 0.0
  %768 = vmatpush1.msra.mxu0 0.0
  %769 = vmatprep.subr.mxu0 0.0
  %770 = vmatpush1.msra.mxu0 0.0
  %771 = vmatprep.subr.mxu0 0.0
  %772 = vmatpush1.msra.mxu0 0.0
  %773 = vmatprep.subr.mxu0 0.0
  %774 = vmatpush1.msra.mxu0 0.0
  %775 = vmatprep.subr.mxu0 0.0
  %776 = vmatpush1.msra.mxu0 0.0
  %777 = vmatprep.subr.mxu0 0.0
  %778 = vmatpush1.msra.mxu0 0.0
  %779 = vmatprep.subr.mxu0 0.0
  %780 = vmatpush1.msra.mxu0 0.0
  %781 = vmatprep.subr.mxu0 0.0
  %782 = vmatpush1.msra.mxu0 0.0
  %783 = vmatprep.subr.mxu0 0.0
  %784 = vmatpush1.msra.mxu0 0.0
  %785 = vmatprep.subr.mxu0 0.0
  %786 = vmatpush1.msra.mxu0 0.0
  %787 = vmatprep.subr.mxu0 0.0
  %788 = vmatpush1.msra.mxu0 0.0
  %789 = vmatprep.subr.mxu0 0.0
  %790 = vmatpush1.msra.mxu0 0.0
  %791 = vmatprep.subr.mxu0 0.0
  %792 = vmatpush1.msra.mxu0 %v637
  %793 = vmatprep.subr.mxu0 0.0
  %794 = vmatpush1.msra.mxu0 %v634
  %795 = vmatprep.subr.mxu0 0.0
  %796 = vmatpush1.msra.mxu0 %v631
  %797 = vmatprep.subr.mxu0 0.0
  %798 = vmatpush1.msra.mxu0 %v628
  %799 = vmatprep.subr.mxu0 0.0
  %800 = vmatpush2.msra.mxu0 0.0
  %801 = vmatprep.subr.mxu0 0.0
  %802 = vmatpush2.msra.mxu0 0.0
  %803 = vmatprep.subr.mxu0 0.0
  %804 = vmatpush2.msra.mxu0 0.0
  %805 = vmatprep.subr.mxu0 0.0
  %806 = vmatpush2.msra.mxu0 0.0
  %807 = vmatprep.subr.mxu0 0.0
  %808 = vmatpush2.msra.mxu0 0.0
  %809 = vmatprep.subr.mxu0 0.0
  %810 = vmatpush2.msra.mxu0 0.0
  %811 = vmatprep.subr.mxu0 0.0
  %812 = vmatpush2.msra.mxu0 0.0
  %813 = vmatprep.subr.mxu0 0.0
  %814 = vmatpush2.msra.mxu0 0.0
  %815 = vmatprep.subr.mxu0 0.0
  %816 = vmatpush2.msra.mxu0 0.0
  %817 = vmatprep.subr.mxu0 0.0
  %818 = vmatpush2.msra.mxu0 0.0
  %819 = vmatprep.subr.mxu0 0.0
  %820 = vmatpush2.msra.mxu0 0.0
  %821 = vmatprep.subr.mxu0 0.0
  %822 = vmatpush2.msra.mxu0 0.0
  %823 = vmatprep.subr.mxu0 0.0
  %824 = vmatpush2.msra.mxu0 0.0
  %825 = vmatprep.subr.mxu0 0.0
  %826 = vmatpush2.msra.mxu0 0.0
  %827 = vmatprep.subr.mxu0 0.0
  %828 = vmatpush2.msra.mxu0 0.0
  %829 = vmatprep.subr.mxu0 0.0
  %830 = vmatpush2.msra.mxu0 0.0
  %831 = vmatprep.mubr.f32.mxu0 0.0
  %832 = vmatmul.mubr.f32.gmra.mxu0 %v667
  %v833 = vpop.f32.mrf.mxu0
  %v834 = vadd.f32 %v649, %v833
  %v835 = vpop.f32.mrf.mxu0
  %836 = vmatprep.mubr.f32.mxu0 0.0
  %837 = vmatmul.mubr.f32.gmra.mxu0 %v670
  %v838 = vpop.f32.mrf.mxu0
  %v839 = vadd.f32 %v654, %v838
  %v840 = vpop.f32.mrf.mxu0
  %841 = vmatprep.mubr.f32.mxu0 0.0
  %842 = vmatmul.mubr.f32.gmra.mxu0 %v673
  %v843 = vpop.f32.mrf.mxu0
  %v844 = vadd.f32 %v659, %v843
  %v845 = vpop.f32.mrf.mxu0
  %846 = vmatprep.mubr.f32.mxu0 0.0
  %847 = vmatmul.mubr.f32.gmra.mxu0 %v676
  %v848 = vpop.f32.mrf.mxu0
  %v849 = vadd.f32 %v664, %v848
  %v850 = vpop.f32.mrf.mxu0
  %851 = vdwg.mxu0
  %v852 = vmax.f32 %v745, 0.0
  %v853 = vmax.f32 %v747, 0.0
  %v854 = vmax.f32 %v834, 0.0
  %v855 = vmax.f32 %v751, 0.0
  %v856 = vmax.f32 %v753, 0.0
  %v857 = vmax.f32 %v839, 0.0
  %v858 = vmax.f32 %v757, 0.0
  %v859 = vmax.f32 %v759, 0.0
  %v860 = vmax.f32 %v844, 0.0
  %v861 = vmax.f32 %v763, 0.0
  %v862 = vmax.f32 %v765, 0.0
  %v863 = vmax.f32 %v849, 0.0
  %v864 = vld [vmem:[%s7] sm:$0xff]
  %v865 = vld [vmem:[%s8] sm:$0x1]
  %v867 = vlaneseq
  %v868 = vshrl.u32 %v867, 7
  %v869 = vsub.s32 0, %v868
  %v870 = vrot.slane %v865, %v869
  %872 = vxpose.xlu0.b32.start [1/16] %v852, 128
  %873 = vxpose.xlu0.b32.cont [2/16] %v855, 128
  %874 = vxpose.xlu0.b32.cont [3/16] %v858, 128
  %875 = vxpose.xlu0.b32.cont [4/16] %v861, 128
  %876 = vxpose.xlu0.b32.cont [5/16] 0.0, 128
  %877 = vxpose.xlu0.b32.cont [6/16] 0.0, 128
  %878 = vxpose.xlu0.b32.cont [7/16] 0.0, 128
  %879 = vxpose.xlu0.b32.cont [8/16] 0.0, 128
  %880 = vxpose.xlu0.b32.cont [9/16] 0.0, 128
  %881 = vxpose.xlu0.b32.cont [10/16] 0.0, 128
  %882 = vxpose.xlu0.b32.cont [11/16] 0.0, 128
  %883 = vxpose.xlu0.b32.cont [12/16] 0.0, 128
  %884 = vxpose.xlu0.b32.cont [13/16] 0.0, 128
  %885 = vxpose.xlu0.b32.cont [14/16] 0.0, 128
  %886 = vxpose.xlu0.b32.cont [15/16] 0.0, 128
  %887 = vxpose.xlu0.b32.end [16/16] 0.0, 128
  %v888 = vpop.trf.xlu0
  %v889 = vpop.trf.xlu0
  %v890 = vpop.trf.xlu0
  %v891 = vpop.trf.xlu0
  %v892 = vpop.trf.xlu0
  %v893 = vpop.trf.xlu0
  %v894 = vpop.trf.xlu0
  %v895 = vpop.trf.xlu0
  %v896 = vpop.trf.xlu0
  %v897 = vpop.trf.xlu0
  %v898 = vpop.trf.xlu0
  %v899 = vpop.trf.xlu0
  %v900 = vpop.trf.xlu0
  %v901 = vpop.trf.xlu0
  %v902 = vpop.trf.xlu0
  %v903 = vpop.trf.xlu0
  %904 = vxpose.xlu0.b32.start [1/16] %v853, 128
  %905 = vxpose.xlu0.b32.cont [2/16] %v856, 128
  %906 = vxpose.xlu0.b32.cont [3/16] %v859, 128
  %907 = vxpose.xlu0.b32.cont [4/16] %v862, 128
  %908 = vxpose.xlu0.b32.cont [5/16] 0.0, 128
  %909 = vxpose.xlu0.b32.cont [6/16] 0.0, 128
  %910 = vxpose.xlu0.b32.cont [7/16] 0.0, 128
  %911 = vxpose.xlu0.b32.cont [8/16] 0.0, 128
  %912 = vxpose.xlu0.b32.cont [9/16] 0.0, 128
  %913 = vxpose.xlu0.b32.cont [10/16] 0.0, 128
  %914 = vxpose.xlu0.b32.cont [11/16] 0.0, 128
  %915 = vxpose.xlu0.b32.cont [12/16] 0.0, 128
  %916 = vxpose.xlu0.b32.cont [13/16] 0.0, 128
  %917 = vxpose.xlu0.b32.cont [14/16] 0.0, 128
  %918 = vxpose.xlu0.b32.cont [15/16] 0.0, 128
  %919 = vxpose.xlu0.b32.end [16/16] 0.0, 128
  %v920 = vpop.trf.xlu0
  %v921 = vpop.trf.xlu0
  %v922 = vpop.trf.xlu0
  %v923 = vpop.trf.xlu0
  %v924 = vpop.trf.xlu0
  %v925 = vpop.trf.xlu0
  %v926 = vpop.trf.xlu0
  %v927 = vpop.trf.xlu0
  %v928 = vpop.trf.xlu0
  %v929 = vpop.trf.xlu0
  %v930 = vpop.trf.xlu0
  %v931 = vpop.trf.xlu0
  %v932 = vpop.trf.xlu0
  %v933 = vpop.trf.xlu0
  %v934 = vpop.trf.xlu0
  %v935 = vpop.trf.xlu0
  %936 = vxpose.xlu0.b32.start [1/16] %v854, 128
  %937 = vxpose.xlu0.b32.cont [2/16] %v857, 128
  %938 = vxpose.xlu0.b32.cont [3/16] %v860, 128
  %939 = vxpose.xlu0.b32.cont [4/16] %v863, 128
  %940 = vxpose.xlu0.b32.cont [5/16] 0.0, 128
  %941 = vxpose.xlu0.b32.cont [6/16] 0.0, 128
  %942 = vxpose.xlu0.b32.cont [7/16] 0.0, 128
  %943 = vxpose.xlu0.b32.cont [8/16] 0.0, 128
  %944 = vxpose.xlu0.b32.cont [9/16] 0.0, 128
  %945 = vxpose.xlu0.b32.cont [10/16] 0.0, 128
  %946 = vxpose.xlu0.b32.cont [11/16] 0.0, 128
  %947 = vxpose.xlu0.b32.cont [12/16] 0.0, 128
  %948 = vxpose.xlu0.b32.cont [13/16] 0.0, 128
  %949 = vxpose.xlu0.b32.cont [14/16] 0.0, 128
  %950 = vxpose.xlu0.b32.cont [15/16] 0.0, 128
  %951 = vxpose.xlu0.b32.end [16/16] 0.0, 128
  %v952 = vpop.trf.xlu0
  %v953 = vpop.trf.xlu0
  %v954 = vpop.trf.xlu0
  %v955 = vpop.trf.xlu0
  %v956 = vpop.trf.xlu0
  %v957 = vpop.trf.xlu0
  %v958 = vpop.trf.xlu0
  %v959 = vpop.trf.xlu0
  %v960 = vpop.trf.xlu0
  %v961 = vpop.trf.xlu0
  %v962 = vpop.trf.xlu0
  %v963 = vpop.trf.xlu0
  %v964 = vpop.trf.xlu0
  %v965 = vpop.trf.xlu0
  %v966 = vpop.trf.xlu0
  %v967 = vpop.trf.xlu0
  %v969 = vsel %vm439, %v888, 0
  %v972 = vsel %vm439, %v889, 0
  %v975 = vsel %vm439, %v890, 0
  %v978 = vsel %vm439, %v891, 0
  %v981 = vsel %vm439, %v892, 0
  %v984 = vsel %vm439, %v893, 0
  %v987 = vsel %vm439, %v894, 0
  %v990 = vsel %vm439, %v895, 0
  %v993 = vsel %vm439, %v896, 0
  %v996 = vsel %vm439, %v897, 0
  %v999 = vsel %vm439, %v898, 0
  %v1002 = vsel %vm439, %v899, 0
  %v1005 = vsel %vm439, %v900, 0
  %v1008 = vsel %vm439, %v901, 0
  %v1011 = vsel %vm439, %v902, 0
  %v1014 = vsel %vm439, %v903, 0
  %v1017 = vsel %vm439, %v920, 0
  %v1020 = vsel %vm439, %v921, 0
  %v1023 = vsel %vm439, %v922, 0
  %v1026 = vsel %vm439, %v923, 0
  %v1029 = vsel %vm439, %v924, 0
  %v1032 = vsel %vm439, %v925, 0
  %v1035 = vsel %vm439, %v926, 0
  %v1038 = vsel %vm439, %v927, 0
  %v1041 = vsel %vm439, %v928, 0
  %v1044 = vsel %vm439, %v929, 0
  %v1047 = vsel %vm439, %v930, 0
  %v1050 = vsel %vm439, %v931, 0
  %v1053 = vsel %vm439, %v932, 0
  %v1056 = vsel %vm439, %v933, 0
  %v1059 = vsel %vm439, %v934, 0
  %v1062 = vsel %vm439, %v935, 0
  %v1065 = vsel %vm439, %v952, 0
  %v1068 = vsel %vm439, %v953, 0
  %v1071 = vsel %vm439, %v954, 0
  %v1074 = vsel %vm439, %v955, 0
  %v1077 = vsel %vm439, %v956, 0
  %v1080 = vsel %vm439, %v957, 0
  %v1083 = vsel %vm439, %v864, 0
  %1085 = vmatprep.subr.mxu0 0.0
  %1086 = vmatpush1.xpose.msra.mxu0 0.0
  %1087 = vmatprep.subr.mxu0 0.0
  %1088 = vmatpush1.xpose.msra.mxu0 0.0
  %1089 = vmatprep.subr.mxu0 0.0
  %1090 = vmatpush1.xpose.msra.mxu0 0.0
  %1091 = vmatprep.subr.mxu0 0.0
  %1092 = vmatpush1.xpose.msra.mxu0 0.0
  %1093 = vmatprep.subr.mxu0 0.0
  %1094 = vmatpush1.xpose.msra.mxu0 0.0
  %1095 = vmatprep.subr.mxu0 0.0
  %1096 = vmatpush1.xpose.msra.mxu0 0.0
  %1097 = vmatprep.subr.mxu0 0.0
  %1098 = vmatpush1.xpose.msra.mxu0 0.0
  %1099 = vmatprep.subr.mxu0 0.0
  %1100 = vmatpush1.xpose.msra.mxu0 0.0
  %1101 = vmatprep.subr.mxu0 0.0
  %1102 = vmatpush1.xpose.msra.mxu0 0.0
  %1103 = vmatprep.subr.mxu0 0.0
  %1104 = vmatpush1.xpose.msra.mxu0 0.0
  %1105 = vmatprep.subr.mxu0 0.0
  %1106 = vmatpush1.xpose.msra.mxu0 0.0
  %1107 = vmatprep.subr.mxu0 0.0
  %1108 = vmatpush1.xpose.msra.mxu0 0.0
  %1109 = vmatprep.subr.mxu0 0.0
  %1110 = vmatpush1.xpose.msra.mxu0 0.0
  %1111 = vmatprep.subr.mxu0 0.0
  %1112 = vmatpush1.xpose.msra.mxu0 0.0
  %1113 = vmatprep.subr.mxu0 0.0
  %1114 = vmatpush1.xpose.msra.mxu0 0.0
  %1115 = vmatprep.subr.mxu0 0.0
  %1116 = vmatpush1.xpose.msra.mxu0 %v1083
  %1117 = vmatprep.subr.mxu0 0.0
  %1118 = vmatpush2.xpose.msra.mxu0 0.0
  %1119 = vmatprep.subr.mxu0 0.0
  %1120 = vmatpush2.xpose.msra.mxu0 0.0
  %1121 = vmatprep.subr.mxu0 0.0
  %1122 = vmatpush2.xpose.msra.mxu0 0.0
  %1123 = vmatprep.subr.mxu0 0.0
  %1124 = vmatpush2.xpose.msra.mxu0 0.0
  %1125 = vmatprep.subr.mxu0 0.0
  %1126 = vmatpush2.xpose.msra.mxu0 0.0
  %1127 = vmatprep.subr.mxu0 0.0
  %1128 = vmatpush2.xpose.msra.mxu0 0.0
  %1129 = vmatprep.subr.mxu0 0.0
  %1130 = vmatpush2.xpose.msra.mxu0 0.0
  %1131 = vmatprep.subr.mxu0 0.0
  %1132 = vmatpush2.xpose.msra.mxu0 0.0
  %1133 = vmatprep.subr.mxu0 0.0
  %1134 = vmatpush2.xpose.msra.mxu0 0.0
  %1135 = vmatprep.subr.mxu0 0.0
  %1136 = vmatpush2.xpose.msra.mxu0 0.0
  %1137 = vmatprep.subr.mxu0 0.0
  %1138 = vmatpush2.xpose.msra.mxu0 0.0
  %1139 = vmatprep.subr.mxu0 0.0
  %1140 = vmatpush2.xpose.msra.mxu0 0.0
  %1141 = vmatprep.subr.mxu0 0.0
  %1142 = vmatpush2.xpose.msra.mxu0 0.0
  %1143 = vmatprep.subr.mxu0 0.0
  %1144 = vmatpush2.xpose.msra.mxu0 0.0
  %1145 = vmatprep.subr.mxu0 0.0
  %1146 = vmatpush2.xpose.msra.mxu0 0.0
  %1147 = vmatprep.subr.mxu0 0.0
  %1148 = vmatpush2.xpose.msra.mxu0 0.0
  %1149 = vmatprep.mubr.f32.mxu0 0.0
  %1150 = vmatmul.mubr.f32.gmra.mxu0 %v969
  %v1151 = vpop.f32.mrf.mxu0
  %v1152 = vadd.f32 %v870, %v1151
  %v1153 = vpop.f32.mrf.mxu0
  %1154 = vmatprep.mubr.f32.mxu0 0.0
  %1155 = vmatmul.mubr.f32.gmra.mxu0 %v972
  %v1156 = vpop.f32.mrf.mxu0
  %v1157 = vadd.f32 %v870, %v1156
  %v1158 = vpop.f32.mrf.mxu0
  %1159 = vmatprep.mubr.f32.mxu0 0.0
  %1160 = vmatmul.mubr.f32.gmra.mxu0 %v975
  %v1161 = vpop.f32.mrf.mxu0
  %v1162 = vadd.f32 %v870, %v1161
  %v1163 = vpop.f32.mrf.mxu0
  %1164 = vmatprep.mubr.f32.mxu0 0.0
  %1165 = vmatmul.mubr.f32.gmra.mxu0 %v978
  %v1166 = vpop.f32.mrf.mxu0
  %v1167 = vadd.f32 %v870, %v1166
  %v1168 = vpop.f32.mrf.mxu0
  %1169 = vmatprep.mubr.f32.mxu0 0.0
  %1170 = vmatmul.mubr.f32.gmra.mxu0 %v981
  %v1171 = vpop.f32.mrf.mxu0
  %v1172 = vadd.f32 %v870, %v1171
  %v1173 = vpop.f32.mrf.mxu0
  %1174 = vmatprep.mubr.f32.mxu0 0.0
  %1175 = vmatmul.mubr.f32.gmra.mxu0 %v984
  %v1176 = vpop.f32.mrf.mxu0
  %v1177 = vadd.f32 %v870, %v1176
  %v1178 = vpop.f32.mrf.mxu0
  %1179 = vmatprep.mubr.f32.mxu0 0.0
  %1180 = vmatmul.mubr.f32.gmra.mxu0 %v987
  %v1181 = vpop.f32.mrf.mxu0
  %v1182 = vadd.f32 %v870, %v1181
  %v1183 = vpop.f32.mrf.mxu0
  %1184 = vmatprep.mubr.f32.mxu0 0.0
  %1185 = vmatmul.mubr.f32.gmra.mxu0 %v990
  %v1186 = vpop.f32.mrf.mxu0
  %v1187 = vadd.f32 %v870, %v1186
  %v1188 = vpop.f32.mrf.mxu0
  %1189 = vmatprep.mubr.f32.mxu0 0.0
  %1190 = vmatmul.mubr.f32.gmra.mxu0 %v993
  %v1191 = vpop.f32.mrf.mxu0
  %v1192 = vadd.f32 %v870, %v1191
  %v1193 = vpop.f32.mrf.mxu0
  %1194 = vmatprep.mubr.f32.mxu0 0.0
  %1195 = vmatmul.mubr.f32.gmra.mxu0 %v996
  %v1196 = vpop.f32.mrf.mxu0
  %v1197 = vadd.f32 %v870, %v1196
  %v1198 = vpop.f32.mrf.mxu0
  %1199 = vmatprep.mubr.f32.mxu0 0.0
  %1200 = vmatmul.mubr.f32.gmra.mxu0 %v999
  %v1201 = vpop.f32.mrf.mxu0
  %v1202 = vadd.f32 %v870, %v1201
  %v1203 = vpop.f32.mrf.mxu0
  %1204 = vmatprep.mubr.f32.mxu0 0.0
  %1205 = vmatmul.mubr.f32.gmra.mxu0 %v1002
  %v1206 = vpop.f32.mrf.mxu0
  %v1207 = vadd.f32 %v870, %v1206
  %v1208 = vpop.f32.mrf.mxu0
  %1209 = vmatprep.mubr.f32.mxu0 0.0
  %1210 = vmatmul.mubr.f32.gmra.mxu0 %v1005
  %v1211 = vpop.f32.mrf.mxu0
  %v1212 = vadd.f32 %v870, %v1211
  %v1213 = vpop.f32.mrf.mxu0
  %1214 = vmatprep.mubr.f32.mxu0 0.0
  %1215 = vmatmul.mubr.f32.gmra.mxu0 %v1008
  %v1216 = vpop.f32.mrf.mxu0
  %v1217 = vadd.f32 %v870, %v1216
  %v1218 = vpop.f32.mrf.mxu0
  %1219 = vmatprep.mubr.f32.mxu0 0.0
  %1220 = vmatmul.mubr.f32.gmra.mxu0 %v1011
  %v1221 = vpop.f32.mrf.mxu0
  %v1222 = vadd.f32 %v870, %v1221
  %v1223 = vpop.f32.mrf.mxu0
  %1224 = vmatprep.mubr.f32.mxu0 0.0
  %1225 = vmatmul.mubr.f32.gmra.mxu0 %v1014
  %v1226 = vpop.f32.mrf.mxu0
  %v1227 = vadd.f32 %v870, %v1226
  %v1228 = vpop.f32.mrf.mxu0
  %1229 = vmatprep.mubr.f32.mxu0 0.0
  %1230 = vmatmul.mubr.f32.gmra.mxu0 %v1017
  %v1231 = vpop.f32.mrf.mxu0
  %v1232 = vadd.f32 %v870, %v1231
  %v1233 = vpop.f32.mrf.mxu0
  %1234 = vmatprep.mubr.f32.mxu0 0.0
  %1235 = vmatmul.mubr.f32.gmra.mxu0 %v1020
  %v1236 = vpop.f32.mrf.mxu0
  %v1237 = vadd.f32 %v870, %v1236
  %v1238 = vpop.f32.mrf.mxu0
  %1239 = vmatprep.mubr.f32.mxu0 0.0
  %1240 = vmatmul.mubr.f32.gmra.mxu0 %v1023
  %v1241 = vpop.f32.mrf.mxu0
  %v1242 = vadd.f32 %v870, %v1241
  %v1243 = vpop.f32.mrf.mxu0
  %1244 = vmatprep.mubr.f32.mxu0 0.0
  %1245 = vmatmul.mubr.f32.gmra.mxu0 %v1026
  %v1246 = vpop.f32.mrf.mxu0
  %v1247 = vadd.f32 %v870, %v1246
  %v1248 = vpop.f32.mrf.mxu0
  %1249 = vmatprep.mubr.f32.mxu0 0.0
  %1250 = vmatmul.mubr.f32.gmra.mxu0 %v1029
  %v1251 = vpop.f32.mrf.mxu0
  %v1252 = vadd.f32 %v870, %v1251
  %v1253 = vpop.f32.mrf.mxu0
  %1254 = vmatprep.mubr.f32.mxu0 0.0
  %1255 = vmatmul.mubr.f32.gmra.mxu0 %v1032
  %v1256 = vpop.f32.mrf.mxu0
  %v1257 = vadd.f32 %v870, %v1256
  %v1258 = vpop.f32.mrf.mxu0
  %1259 = vmatprep.mubr.f32.mxu0 0.0
  %1260 = vmatmul.mubr.f32.gmra.mxu0 %v1035
  %v1261 = vpop.f32.mrf.mxu0
  %v1262 = vadd.f32 %v870, %v1261
  %v1263 = vpop.f32.mrf.mxu0
  %1264 = vmatprep.mubr.f32.mxu0 0.0
  %1265 = vmatmul.mubr.f32.gmra.mxu0 %v1038
  %v1266 = vpop.f32.mrf.mxu0
  %v1267 = vadd.f32 %v870, %v1266
  %v1268 = vpop.f32.mrf.mxu0
  %1269 = vmatprep.mubr.f32.mxu0 0.0
  %1270 = vmatmul.mubr.f32.gmra.mxu0 %v1041
  %v1271 = vpop.f32.mrf.mxu0
  %v1272 = vadd.f32 %v870, %v1271
  %v1273 = vpop.f32.mrf.mxu0
  %1274 = vmatprep.mubr.f32.mxu0 0.0
  %1275 = vmatmul.mubr.f32.gmra.mxu0 %v1044
  %v1276 = vpop.f32.mrf.mxu0
  %v1277 = vadd.f32 %v870, %v1276
  %v1278 = vpop.f32.mrf.mxu0
  %1279 = vmatprep.mubr.f32.mxu0 0.0
  %1280 = vmatmul.mubr.f32.gmra.mxu0 %v1047
  %v1281 = vpop.f32.mrf.mxu0
  %v1282 = vadd.f32 %v870, %v1281
  %v1283 = vpop.f32.mrf.mxu0
  %1284 = vmatprep.mubr.f32.mxu0 0.0
  %1285 = vmatmul.mubr.f32.gmra.mxu0 %v1050
  %v1286 = vpop.f32.mrf.mxu0
  %v1287 = vadd.f32 %v870, %v1286
  %v1288 = vpop.f32.mrf.mxu0
  %1289 = vmatprep.mubr.f32.mxu0 0.0
  %1290 = vmatmul.mubr.f32.gmra.mxu0 %v1053
  %v1291 = vpop.f32.mrf.mxu0
  %v1292 = vadd.f32 %v870, %v1291
  %v1293 = vpop.f32.mrf.mxu0
  %1294 = vmatprep.mubr.f32.mxu0 0.0
  %1295 = vmatmul.mubr.f32.gmra.mxu0 %v1056
  %v1296 = vpop.f32.mrf.mxu0
  %v1297 = vadd.f32 %v870, %v1296
  %v1298 = vpop.f32.mrf.mxu0
  %1299 = vmatprep.mubr.f32.mxu0 0.0
  %1300 = vmatmul.mubr.f32.gmra.mxu0 %v1059
  %v1301 = vpop.f32.mrf.mxu0
  %v1302 = vadd.f32 %v870, %v1301
  %v1303 = vpop.f32.mrf.mxu0
  %1304 = vmatprep.mubr.f32.mxu0 0.0
  %1305 = vmatmul.mubr.f32.gmra.mxu0 %v1062
  %v1306 = vpop.f32.mrf.mxu0
  %v1307 = vadd.f32 %v870, %v1306
  %v1308 = vpop.f32.mrf.mxu0
  %1309 = vmatprep.mubr.f32.mxu0 0.0
  %1310 = vmatmul.mubr.f32.gmra.mxu0 %v1065
  %v1311 = vpop.f32.mrf.mxu0
  %v1312 = vadd.f32 %v870, %v1311
  %v1313 = vpop.f32.mrf.mxu0
  %1314 = vmatprep.mubr.f32.mxu0 0.0
  %1315 = vmatmul.mubr.f32.gmra.mxu0 %v1068
  %v1316 = vpop.f32.mrf.mxu0
  %v1317 = vadd.f32 %v870, %v1316
  %v1318 = vpop.f32.mrf.mxu0
  %1319 = vmatprep.mubr.f32.mxu0 0.0
  %1320 = vmatmul.mubr.f32.gmra.mxu0 %v1071
  %v1321 = vpop.f32.mrf.mxu0
  %v1322 = vadd.f32 %v870, %v1321
  %v1323 = vpop.f32.mrf.mxu0
  %1324 = vmatprep.mubr.f32.mxu0 0.0
  %1325 = vmatmul.mubr.f32.gmra.mxu0 %v1074
  %v1326 = vpop.f32.mrf.mxu0
  %v1327 = vadd.f32 %v870, %v1326
  %v1328 = vpop.f32.mrf.mxu0
  %1329 = vmatprep.mubr.f32.mxu0 0.0
  %1330 = vmatmul.mubr.f32.gmra.mxu0 %v1077
  %v1331 = vpop.f32.mrf.mxu0
  %v1332 = vadd.f32 %v870, %v1331
  %v1333 = vpop.f32.mrf.mxu0
  %1334 = vmatprep.mubr.f32.mxu0 0.0
  %1335 = vmatmul.mubr.f32.gmra.mxu0 %v1080
  %v1336 = vpop.f32.mrf.mxu0
  %v1337 = vadd.f32 %v870, %v1336
  %v1338 = vpop.f32.mrf.mxu0
  %1339 = vdwg.mxu0
  %vm1340 = vcmask 64512
  %1341 = vst.msk [vmem:[%s9] sm:$0xff] %vm1340, %v1152
  %1342 = vst.msk [vmem:[%s9 + $0x8] sm:$0xff] %vm1340, %v1157
  %1343 = vst.msk [vmem:[%s9 + $0x10] sm:$0xff] %vm1340, %v1162
  %1344 = vst.msk [vmem:[%s9 + $0x18] sm:$0xff] %vm1340, %v1167
  %1345 = vst.msk [vmem:[%s9 + $0x20] sm:$0xff] %vm1340, %v1172
  %1346 = vst.msk [vmem:[%s9 + $0x28] sm:$0xff] %vm1340, %v1177
  %1347 = vst.msk [vmem:[%s9 + $0x30] sm:$0xff] %vm1340, %v1182
  %1348 = vst.msk [vmem:[%s9 + $0x38] sm:$0xff] %vm1340, %v1187
  %1349 = vst.msk [vmem:[%s9 + $0x40] sm:$0xff] %vm1340, %v1192
  %1350 = vst.msk [vmem:[%s9 + $0x48] sm:$0xff] %vm1340, %v1197
  %1351 = vst.msk [vmem:[%s9 + $0x50] sm:$0xff] %vm1340, %v1202
  %1352 = vst.msk [vmem:[%s9 + $0x58] sm:$0xff] %vm1340, %v1207
  %1353 = vst.msk [vmem:[%s9 + $0x60] sm:$0xff] %vm1340, %v1212
  %1354 = vst.msk [vmem:[%s9 + $0x68] sm:$0xff] %vm1340, %v1217
  %1355 = vst.msk [vmem:[%s9 + $0x70] sm:$0xff] %vm1340, %v1222
  %1356 = vst.msk [vmem:[%s9 + $0x78] sm:$0xff] %vm1340, %v1227
  %1357 = vst.msk [vmem:[%s9 + $0x80] sm:$0xff] %vm1340, %v1232
  %1358 = vst.msk [vmem:[%s9 + $0x88] sm:$0xff] %vm1340, %v1237
  %1359 = vst.msk [vmem:[%s9 + $0x90] sm:$0xff] %vm1340, %v1242
  %1360 = vst.msk [vmem:[%s9 + $0x98] sm:$0xff] %vm1340, %v1247
  %1361 = vst.msk [vmem:[%s9 + $0xa0] sm:$0xff] %vm1340, %v1252
  %1362 = vst.msk [vmem:[%s9 + $0xa8] sm:$0xff] %vm1340, %v1257
  %1363 = vst.msk [vmem:[%s9 + $0xb0] sm:$0xff] %vm1340, %v1262
  %1364 = vst.msk [vmem:[%s9 + $0xb8] sm:$0xff] %vm1340, %v1267
  %1365 = vst.msk [vmem:[%s9 + $0xc0] sm:$0xff] %vm1340, %v1272
  %1366 = vst.msk [vmem:[%s9 + $0xc8] sm:$0xff] %vm1340, %v1277
  %1367 = vst.msk [vmem:[%s9 + $0xd0] sm:$0xff] %vm1340, %v1282
  %1368 = vst.msk [vmem:[%s9 + $0xd8] sm:$0xff] %vm1340, %v1287
  %1369 = vst.msk [vmem:[%s9 + $0xe0] sm:$0xff] %vm1340, %v1292
  %1370 = vst.msk [vmem:[%s9 + $0xe8] sm:$0xff] %vm1340, %v1297
  %1371 = vst.msk [vmem:[%s9 + $0xf0] sm:$0xff] %vm1340, %v1302
  %1372 = vst.msk [vmem:[%s9 + $0xf8] sm:$0xff] %vm1340, %v1307
  %1373 = vst.msk [vmem:[%s9 + $0x100] sm:$0xff] %vm1340, %v1312
  %1374 = vst.msk [vmem:[%s9 + $0x108] sm:$0xff] %vm1340, %v1317
  %1375 = vst.msk [vmem:[%s9 + $0x110] sm:$0xff] %vm1340, %v1322
  %1376 = vst.msk [vmem:[%s9 + $0x118] sm:$0xff] %vm1340, %v1327
  %1377 = vst.msk [vmem:[%s9 + $0x120] sm:$0xff] %vm1340, %v1332
  %vm1378 = vcmask 60416
  %1379 = vst.msk [vmem:[%s9 + $0x128] sm:$0xf] %vm1378, %v1337
  // Predicated region
  $region38: #{tpu_custom_call.1} parent=0 // pred_check
    _
  $region39: #{tpu_custom_call.1} parent=0 // pred_check_branch
    %1381 = sbr.rel (0) target = $region41
  $region40: #{tpu_custom_call.1} parent=0 // pred_region
    _
  $region41: #{tpu_custom_call.1} parent=0 // pred_fallthru
    _
  // Predicated region
  $region42: #{tpu_custom_call.1} parent=0 // pred_check
    _
  $region43: #{tpu_custom_call.1} parent=0 // pred_check_branch
    %1383 = sbr.rel (0) target = $region45
  $region44: #{tpu_custom_call.1} parent=0 // pred_region
    _
  $region45: #{tpu_custom_call.1} parent=0 // pred_fallthru
    _

</llo_original>
